<compile_context>
chip_gen: v5e
topology: v5e:2x2
jax: 0.10.0
libtpu: 0.0.40
codegen_flags: <defaults>
</compile_context>

<pallas_src>
import jax
import jax.numpy as jnp
from jax import lax
from jax.experimental import pallas as pl
from jax.experimental.pallas import tpu as pltpu

_LANE = 128
_SUBLANE = 8


def _round_up(x, m):
    return (x + m - 1) // m * m


def costco_kernel(e_ref, w1_ref, b1_ref, w2_ref, b2_ref, fcw_ref, fcb_ref,
                  out_ref):
    """Fused CostCo forward for one batch tile.

    e_ref:   (bb, 3*D)      [ei|ej|ek] concatenated along features
    w1_ref:  (3*D, 3*ncp)   block-diagonal conv1 weight (lane-padded)
    b1_ref:  (1, 3*ncp)     conv1 bias tiled 3x (f32)
    w2_ref:  (3*ncp, ncp)   conv2 weight, 3 kernel rows stacked along K
    b2_ref:  (1, ncp)       conv2 bias (f32)
    fcw_ref: (1, ncp)       fc1 weight row (padded lanes exactly zero, f32)
    fcb_ref: (1, 1)         fc1 bias (f32)
    out_ref: (1, bb)        lane-dense output row for this tile
    """
    # conv1 (kernel (1,D)) for all 3 rows in ONE matmul via block-diag w1.
    s = jnp.dot(e_ref[...], w1_ref[...], preferred_element_type=jnp.float32)
    s = jnp.maximum(s + b1_ref[...], 0.0)                   # (bb, 3*ncp) f32

    # conv2 (kernel (3,1)) fused: K = 3*ncp contraction.
    y = jnp.dot(s.astype(w2_ref.dtype), w2_ref[...],
                preferred_element_type=jnp.float32)
    y = jnp.maximum(y + b2_ref[...], 0.0)                   # (bb, ncp) f32

    # fc1 (nc -> 1): contract ncp lanes, result is a lane-dense (1, bb) row.
    row = lax.dot_general(fcw_ref[...], y,
                          dimension_numbers=(((1,), (1,)), ((), ())),
                          preferred_element_type=jnp.float32)
    out_ref[...] = row + fcb_ref[...]


def init_params(key, i_size, j_size, k_size, embedding_dim, nc):
    ks = jax.random.split(key, 8)
    return {
        "iemb": jax.random.normal(ks[0], (i_size, embedding_dim), jnp.float32),
        "jemb": jax.random.normal(ks[1], (j_size, embedding_dim), jnp.float32),
        "kemb": jax.random.normal(ks[2], (k_size, embedding_dim), jnp.float32),
        # Conv2d(1, nc, (1, D)) weight: (nc, 1, 1, D), bias: (nc,)
        "conv1_w": jax.random.normal(ks[3], (nc, 1, 1, embedding_dim),
                                     jnp.float32) * 0.1,
        "conv1_b": jax.random.normal(ks[4], (nc,), jnp.float32) * 0.1,
        # Conv2d(nc, nc, (3, 1)) weight: (nc, nc, 3, 1), bias: (nc,)
        "conv2_w": jax.random.normal(ks[5], (nc, nc, 3, 1), jnp.float32) * 0.05,
        "conv2_b": jax.random.normal(ks[6], (nc,), jnp.float32) * 0.1,
        # Linear(nc, 1): weight (1, nc), bias (1,)
        "fc1_w": jax.random.normal(ks[7], (1, nc), jnp.float32) * 0.1,
        "fc1_b": jnp.zeros((1,), jnp.float32),
    }


def prepare_costco_weights(params, use_bf16_matmul=False):
    """One-time weight re-layout + lane padding (cache the result).

    use_bf16_matmul: store the two matmul weights in bf16 (MXU-native);
    biases / fc1 / accumulation stay f32.
    """
    nc = params["conv1_w"].shape[0]
    D = params["conv1_w"].shape[-1]
    ncp = _round_up(nc, _LANE)
    pad = ncp - nc
    mm_dtype = jnp.bfloat16 if use_bf16_matmul else jnp.float32

    # conv1: (nc,1,1,D) -> (D, ncp) -> block-diagonal (3*D, 3*ncp) so that
    # [ei|ej|ek] @ w1_bd is the lane-concatenated per-row conv1 output.
    w1t = jnp.pad(params["conv1_w"].reshape(nc, D).T, ((0, 0), (0, pad)))
    w1_bd = jnp.kron(jnp.eye(3, dtype=w1t.dtype), w1t).astype(mm_dtype)
    b1 = jnp.tile(jnp.pad(params["conv1_b"], (0, pad)), 3).reshape(1, 3 * ncp)

    # conv2: (o, c, 3, 1) -> three (c, o) blocks, zero-padded on both axes,
    # stacked along the contraction axis -> (3*ncp, ncp).
    w2 = params["conv2_w"][..., 0]                           # (o, c, 3)
    w2_rows = [jnp.pad(w2[:, :, r].T, ((0, pad), (0, pad))) for r in range(3)]
    w2_cat = jnp.concatenate(w2_rows, axis=0).astype(mm_dtype)
    b2 = jnp.pad(params["conv2_b"], (0, pad)).reshape(1, ncp)

    # fc1: (1, nc) -> lane-padded row; padded lanes contribute exactly zero.
    fcw = jnp.pad(params["fc1_w"].reshape(nc), (0, pad)).reshape(1, ncp)
    fcb = params["fc1_b"].reshape(1, 1)

    return {
        "iemb": params["iemb"], "jemb": params["jemb"], "kemb": params["kemb"],
        "w1": w1_bd, "b1": b1, "w2": w2_cat, "b2": b2, "fcw": fcw, "fcb": fcb,
    }


def _choose_block_b(batch):
    """Batch tile size.

    Small B -> a single block (block == full dim, so any 8-aligned size is a
    legal lane-dense output block). Larger B -> >=2 multiple-of-128 tiles so
    the output row store stays unmasked and the 'parallel' batch axis can
    shard across v7x's two TensorCores; capped at 1024 rows.
    """
    b8 = _round_up(batch, _SUBLANE)
    if b8 <= 128:
        return b8
    half = _round_up((batch + 1) // 2, _LANE)
    return min(1024, half)


@jax.jit
def costco_forward(i_idx, j_idx, k_idx, prepared):
    # TODO(synk): the `is_history` stochastic early-exit (host-side coin flip
    # against `history_prob`) is Python control flow, not kernel work; only
    # the default is_history=False path is implemented.
    ei = jnp.take(prepared["iemb"], i_idx.astype(jnp.int32), axis=0)
    ej = jnp.take(prepared["jemb"], j_idx.astype(jnp.int32), axis=0)
    ek = jnp.take(prepared["kemb"], k_idx.astype(jnp.int32), axis=0)

    # Packed feature layout: (B, 3*D) rows, cast to the matmul dtype.
    e = jnp.concatenate([ei, ej, ek], axis=1).astype(prepared["w1"].dtype)
    B, D3 = e.shape

    block_b = _choose_block_b(B)
    B_pad = _round_up(B, block_b)
    n_tiles = B_pad // block_b
    if B_pad != B:
        e = jnp.pad(e, ((0, B_pad - B), (0, 0)))

    w1, b1 = prepared["w1"], prepared["b1"]
    w2, b2 = prepared["w2"], prepared["b2"]
    fcw, fcb = prepared["fcw"], prepared["fcb"]

    out = pl.pallas_call(
        costco_kernel,
        out_shape=jax.ShapeDtypeStruct((1, B_pad), jnp.float32),
        grid=(n_tiles,),
        in_specs=[
            pl.BlockSpec((block_b, D3), lambda b: (b, 0)),
            pl.BlockSpec(w1.shape, lambda b: (0, 0)),
            pl.BlockSpec(b1.shape, lambda b: (0, 0)),
            pl.BlockSpec(w2.shape, lambda b: (0, 0)),
            pl.BlockSpec(b2.shape, lambda b: (0, 0)),
            pl.BlockSpec(fcw.shape, lambda b: (0, 0)),
            pl.BlockSpec(fcb.shape, lambda b: (0, 0)),
        ],
        out_specs=pl.BlockSpec((1, block_b), lambda b: (0, b)),
        compiler_params=pltpu.CompilerParams(
            dimension_semantics=("parallel",)),
    )(e, w1, b1, w2, b2, fcw, fcb)

    # Lane-dense (1, B_pad) row -> (B, 1) column (padded batch rows dropped).
    return out[0, :B].reshape(B, 1)


def costco_reference(i_idx, j_idx, k_idx, params):
    """Pure-JAX reference mirroring the PyTorch forward (for verification)."""
    ei = jnp.take(params["iemb"], i_idx.astype(jnp.int32), axis=0)
    ej = jnp.take(params["jemb"], j_idx.astype(jnp.int32), axis=0)
    ek = jnp.take(params["kemb"], k_idx.astype(jnp.int32), axis=0)
    H = jnp.stack([ei, ej, ek], axis=1)                       # (B, 3, D)
    nc = params["conv1_w"].shape[0]
    D = ei.shape[1]
    w1 = params["conv1_w"].reshape(nc, D)                     # (nc, D)
    s = jnp.einsum("brd,cd->brc", H, w1) + params["conv1_b"]  # (B, 3, nc)
    s = jnp.maximum(s, 0.0)
    w2 = params["conv2_w"][..., 0]                            # (o, c, 3)
    y = jnp.einsum("brc,ocr->bo", s, w2) + params["conv2_b"]  # (B, nc)
    y = jnp.maximum(y, 0.0)
    return y @ params["fc1_w"].T + params["fc1_b"]            # (B, 1)


if __name__ == "__main__":
    key = jax.random.PRNGKey(0)
    i_size, j_size, k_size = 40, 50, 60
    embedding_dim = 16
    nc = 100
    B = 8

    pkey, ik, jk, kk = jax.random.split(key, 4)
    params = init_params(pkey, i_size, j_size, k_size, embedding_dim, nc)

    i_idx = jax.random.randint(ik, (B,), 0, i_size)
    j_idx = jax.random.randint(jk, (B,), 0, j_size)
    k_idx = jax.random.randint(kk, (B,), 0, k_size)

    ref = costco_reference(i_idx, j_idx, k_idx, params)

    # f32 matmul path: matches the f32 PyTorch-style reference tightly.
    prepared_f32 = prepare_costco_weights(params, use_bf16_matmul=False)
    out = costco_forward(i_idx, j_idx, k_idx, prepared_f32)
    jax.block_until_ready(out)
    assert out.shape == (B, 1)
    assert jnp.allclose(out, ref, atol=1e-4, rtol=1e-4), (
        f"f32 mismatch: max abs diff {jnp.max(jnp.abs(out - ref))}")

    # Opt-in bf16 matmul path (MXU-native); looser tolerance by design.
    prepared_bf16 = prepare_costco_weights(params, use_bf16_matmul=True)
    out_bf16 = costco_forward(i_idx, j_idx, k_idx, prepared_bf16)
    jax.block_until_ready(out_bf16)
    assert jnp.allclose(out_bf16, ref, atol=1e-1, rtol=1e-1), (
        f"bf16 mismatch: max abs diff {jnp.max(jnp.abs(out_bf16 - ref))}")

    print("KERNEL_OK")
</pallas_src>

<mosaic_0001>
module attributes {stable_mosaic.version = 11 : i64} {
  func.func @costco_kernel(%arg0: i32, %arg1: memref<8x48xf32, #tpu.memory_space<vmem>>, %arg2: memref<48x384xf32, #tpu.memory_space<vmem>>, %arg3: memref<1x384xf32, #tpu.memory_space<vmem>>, %arg4: memref<384x128xf32, #tpu.memory_space<vmem>>, %arg5: memref<1x128xf32, #tpu.memory_space<vmem>>, %arg6: memref<1x128xf32, #tpu.memory_space<vmem>>, %arg7: memref<1x1xf32, #tpu.memory_space<vmem>>, %arg8: memref<1x8xf32, #tpu.memory_space<vmem>>) attributes {dimension_semantics = [#tpu.dimension_semantics<parallel>], iteration_bounds = array<i64: 1>, scalar_prefetch = 0 : i64, scratch_operands = 0 : i64, tpu.core_type = #tpu.core_type<tc>, window_params = [{transform_indices = @transform_0, window_bounds = array<i64: 8, 48>}, {pipeline_mode = #tpu.pipeline_mode<synchronous>, transform_indices = @transform_1, window_bounds = array<i64: 48, 384>}, {pipeline_mode = #tpu.pipeline_mode<synchronous>, transform_indices = @transform_2, window_bounds = array<i64: 1, 384>}, {pipeline_mode = #tpu.pipeline_mode<synchronous>, transform_indices = @transform_3, window_bounds = array<i64: 384, 128>}, {pipeline_mode = #tpu.pipeline_mode<synchronous>, transform_indices = @transform_4, window_bounds = array<i64: 1, 128>}, {pipeline_mode = #tpu.pipeline_mode<synchronous>, transform_indices = @transform_5, window_bounds = array<i64: 1, 128>}, {pipeline_mode = #tpu.pipeline_mode<synchronous>, transform_indices = @transform_6, window_bounds = array<i64: 1, 1>}, {transform_indices = @transform_7, window_bounds = array<i64: 1, 8>}]} {
    %c0 = arith.constant 0 : index
    %c0_0 = arith.constant 0 : index
    %0 = vector.load %arg1[%c0, %c0_0] : memref<8x48xf32, #tpu.memory_space<vmem>>, vector<8x48xf32>
    %c0_1 = arith.constant 0 : index
    %c0_2 = arith.constant 0 : index
    %1 = vector.load %arg2[%c0_1, %c0_2] : memref<48x384xf32, #tpu.memory_space<vmem>>, vector<48x384xf32>
    %cst = arith.constant dense<0.000000e+00> : vector<8x384xf32>
    %2 = tpu.matmul %0, %1, %cst {dimension_numbers = #tpu.dot_dimension_numbers<[1], [0], [0], [1], [0, 0, 1, 1], [], []>} : vector<8x48xf32>, vector<48x384xf32>, vector<8x384xf32> -> vector<8x384xf32>
    %c0_3 = arith.constant 0 : index
    %c0_4 = arith.constant 0 : index
    %3 = vector.load %arg3[%c0_3, %c0_4] : memref<1x384xf32, #tpu.memory_space<vmem>>, vector<1x384xf32>
    %4 = vector.broadcast %3 : vector<1x384xf32> to vector<8x384xf32>
    %5 = arith.addf %2, %4 : vector<8x384xf32>
    %cst_5 = arith.constant 0.000000e+00 : f32
    %6 = vector.broadcast %cst_5 : f32 to vector<8x384xf32>
    %7 = arith.maximumf %5, %6 : vector<8x384xf32>
    %c0_6 = arith.constant 0 : index
    %c0_7 = arith.constant 0 : index
    %8 = vector.load %arg4[%c0_6, %c0_7] : memref<384x128xf32, #tpu.memory_space<vmem>>, vector<384x128xf32>
    %cst_8 = arith.constant dense<0.000000e+00> : vector<8x128xf32>
    %9 = tpu.matmul %7, %8, %cst_8 {dimension_numbers = #tpu.dot_dimension_numbers<[1], [0], [0], [1], [0, 0, 1, 1], [], []>} : vector<8x384xf32>, vector<384x128xf32>, vector<8x128xf32> -> vector<8x128xf32>
    %c0_9 = arith.constant 0 : index
    %c0_10 = arith.constant 0 : index
    %10 = vector.load %arg5[%c0_9, %c0_10] : memref<1x128xf32, #tpu.memory_space<vmem>>, vector<1x128xf32>
    %11 = vector.broadcast %10 : vector<1x128xf32> to vector<8x128xf32>
    %12 = arith.addf %9, %11 : vector<8x128xf32>
    %cst_11 = arith.constant 0.000000e+00 : f32
    %13 = vector.broadcast %cst_11 : f32 to vector<8x128xf32>
    %14 = arith.maximumf %12, %13 : vector<8x128xf32>
    %c0_12 = arith.constant 0 : index
    %c0_13 = arith.constant 0 : index
    %15 = vector.load %arg6[%c0_12, %c0_13] : memref<1x128xf32, #tpu.memory_space<vmem>>, vector<1x128xf32>
    %cst_14 = arith.constant dense<0.000000e+00> : vector<1x8xf32>
    %16 = tpu.matmul %15, %14, %cst_14 {dimension_numbers = #tpu.dot_dimension_numbers<[1], [1], [0], [0], [0, 0, 1, 0], [], []>} : vector<1x128xf32>, vector<8x128xf32>, vector<1x8xf32> -> vector<1x8xf32>
    %c0_15 = arith.constant 0 : index
    %c0_16 = arith.constant 0 : index
    %17 = vector.load %arg7[%c0_15, %c0_16] : memref<1x1xf32, #tpu.memory_space<vmem>>, vector<1x1xf32>
    %18 = vector.broadcast %17 : vector<1x1xf32> to vector<1x8xf32>
    %19 = arith.addf %16, %18 : vector<1x8xf32>
    %c0_17 = arith.constant 0 : index
    %c0_18 = arith.constant 0 : index
    %20 = vector.load %arg8[%c0_17, %c0_18] : memref<1x8xf32, #tpu.memory_space<vmem>>, vector<1x8xf32>
    tpu.vector_store %arg8[%c0_17, %c0_18], %19 {strides = array<i32>} : memref<1x8xf32, #tpu.memory_space<vmem>>, vector<1x8xf32>,
    return
  }
  func.func @transform_0(%arg0: i32) -> (i32, i32) {
    %c0_i32 = arith.constant 0 : i32
    %c0_i32_0 = arith.constant 0 : i32
    return %arg0, %c0_i32 : i32, i32
  }
  func.func @transform_1(%arg0: i32) -> (i32, i32) {
    %c0_i32 = arith.constant 0 : i32
    %c0_i32_0 = arith.constant 0 : i32
    %c0_i32_1 = arith.constant 0 : i32
    return %c0_i32, %c0_i32_0 : i32, i32
  }
  func.func @transform_2(%arg0: i32) -> (i32, i32) {
    %c0_i32 = arith.constant 0 : i32
    %c0_i32_0 = arith.constant 0 : i32
    %c0_i32_1 = arith.constant 0 : i32
    return %c0_i32, %c0_i32_0 : i32, i32
  }
  func.func @transform_3(%arg0: i32) -> (i32, i32) {
    %c0_i32 = arith.constant 0 : i32
    %c0_i32_0 = arith.constant 0 : i32
    %c0_i32_1 = arith.constant 0 : i32
    return %c0_i32, %c0_i32_0 : i32, i32
  }
  func.func @transform_4(%arg0: i32) -> (i32, i32) {
    %c0_i32 = arith.constant 0 : i32
    %c0_i32_0 = arith.constant 0 : i32
    %c0_i32_1 = arith.constant 0 : i32
    return %c0_i32, %c0_i32_0 : i32, i32
  }
  func.func @transform_5(%arg0: i32) -> (i32, i32) {
    %c0_i32 = arith.constant 0 : i32
    %c0_i32_0 = arith.constant 0 : i32
    %c0_i32_1 = arith.constant 0 : i32
    return %c0_i32, %c0_i32_0 : i32, i32
  }
  func.func @transform_6(%arg0: i32) -> (i32, i32) {
    %c0_i32 = arith.constant 0 : i32
    %c0_i32_0 = arith.constant 0 : i32
    %c0_i32_1 = arith.constant 0 : i32
    return %c0_i32, %c0_i32_0 : i32, i32
  }
  func.func @transform_7(%arg0: i32) -> (i32, i32) {
    %c0_i32 = arith.constant 0 : i32
    %c0_i32_0 = arith.constant 0 : i32
    return %c0_i32, %arg0 : i32, i32
  }
}

</mosaic_0001>

<llo_original>
// kernel: costco_forward.1
$region0: #{costco_forward.1}
  #allocation0 [shape = 'u32[]', space=smem, size = 0x4, offset = 0x4, fixed_abs, tag = 'smem constant byte address 0x4 - core index']
  #allocation1 [shape = 'u32[72,128]{1,0:T(1,128)}', space=vmem, size = 0x9000, scoped, tag = 'internal scratch']
  #allocation2 [shape = 'f32[1,1]{1,0:T(1,128)S(1)}', space=vmem, size = 0x200, scoped, tag = 'scoped memory for costco_forward.1']
  %s0 = inlined_call_operand.vmem [shape: f32[8,48], index: 0, kind: input, shape index: {}]
  %s1 = inlined_call_operand.vmem [shape: f32[48,384], index: 1, kind: input, shape index: {}]
  %s2 = inlined_call_operand.vmem [shape: f32[1,384], index: 2, kind: input, shape index: {}]
  %s3 = inlined_call_operand.hbm [shape: f32[384,128], index: 3, kind: input, shape index: {}]
  %s4 = inlined_call_operand.vmem [shape: f32[1,128], index: 4, kind: input, shape index: {}]
  %s5 = inlined_call_operand.vmem [shape: f32[1,128], index: 5, kind: input, shape index: {}]
  %s6 = inlined_call_operand.<no memory space> [shape: f32[1,1], index: 6, kind: input, shape index: {}]
  %s7 = inlined_call_operand.hbm [shape: f32[1,8], index: 7, kind: output, shape index: {}]
  %s8 = sld [smem:[#allocation0]]
  $region42: #{costco_forward.1} parent=0
    _
  %s10 = ssub.s32 1, %s8
  %s11 = scalar_select 0, %s10, %s8
  %v12 = vstv %s6
  %13 = vst [vmem:[#allocation2] sm:$0x1] %v12
  $region1: #{costco_forward.1} parent=0
    #allocation3 [shape = 'u8[196608]{0}', space=vmem, size = 0x30000, scoped, tag = 'input window, operand 3, single buffered']
    #allocation4 [shape = 's32[1]{0}', space=sflag, size = 0x4, scoped, tag = 'scoped memory for costco_forward.1']
    #allocation5 [shape = 's32[1]{0}', space=sflag, size = 0x4, scoped, tag = 'scoped memory for costco_forward.1']
    #allocation6 [shape = 'u8[512]{0}', space=vmem, size = 0x400, scoped, tag = 'output window, operand 0, single buffered']
    %14 = vsyncpa [#allocation4], 0
    %15 = vsyncpa [#allocation5], 0
    // Predicated region
    $region2: #{costco_forward.1} parent=1 // pred_check
      _
    $region3: #{costco_forward.1} parent=1 // pred_check_branch
      %17 = sbr.rel (0) target = $region5
    $region4: #{costco_forward.1} parent=1 // pred_region
      _
    $region5: #{costco_forward.1} parent=1 // pred_fallthru
      _
    // Predicated region
    $region6: #{costco_forward.1} parent=1 // pred_check
      _
    $region7: #{costco_forward.1} parent=1 // pred_check_branch
      %19 = sbr.rel (0) target = $region9
    $region8: #{costco_forward.1} parent=1 // pred_region
      _
    $region9: #{costco_forward.1} parent=1 // pred_fallthru
      _
    // Predicated region
    $region10: #{costco_forward.1} parent=1 // pred_check
      _
    $region11: #{costco_forward.1} parent=1 // pred_check_branch
      %21 = sbr.rel (0) target = $region13
    $region12: #{costco_forward.1} parent=1 // pred_region
      _
    $region13: #{costco_forward.1} parent=1 // pred_fallthru
      _
    // Predicated region
    $region14: #{costco_forward.1} parent=1 // pred_check
      _
    $region15: #{costco_forward.1} parent=1 // pred_check_branch
      %23 = sbr.rel (0) target = $region17
    $region16: #{costco_forward.1} parent=1 // pred_region
      %25 = vsyncadd [#allocation4], 0
      %s26 = sshll.u32 %s3, 4
      %s27 = int_to_ptr.hbm [resolvable:$true] %s26
      %s28 = sshll.u32 [#allocation3], 4
      %s29 = int_to_ptr.vmem [resolvable:$true] %s28
      %34 = dma.hbm_to_vmem [thread:$0]  %s27, 6144, %s29, [#allocation4], 128, 128, 8
    $region17: #{costco_forward.1} parent=1 // pred_fallthru
      _
    // Predicated region
    $region18: #{costco_forward.1} parent=1 // pred_check
      _
    $region19: #{costco_forward.1} parent=1 // pred_check_branch
      %36 = sbr.rel (0) target = $region21
    $region20: #{costco_forward.1} parent=1 // pred_region
      _
    $region21: #{costco_forward.1} parent=1 // pred_fallthru
      _
    // Predicated region
    $region22: #{costco_forward.1} parent=1 // pred_check
      _
    $region23: #{costco_forward.1} parent=1 // pred_check_branch
      %38 = sbr.rel (0) target = $region25
    $region24: #{costco_forward.1} parent=1 // pred_region
      _
    $region25: #{costco_forward.1} parent=1 // pred_fallthru
      _
    // Predicated region
    $region26: #{costco_forward.1} parent=1 // pred_check
      _
    $region27: #{costco_forward.1} parent=1 // pred_check_branch
      %40 = sbr.rel (0) target = $region29
    $region28: #{costco_forward.1} parent=1 // pred_region
      _
    $region29: #{costco_forward.1} parent=1 // pred_fallthru
      _
    // Predicated region
    $region30: #{costco_forward.1} parent=1 // pred_check
      _
    $region31: #{costco_forward.1} parent=1 // pred_check_branch
      %42 = sbr.rel (0) target = $region33
    $region32: #{costco_forward.1} parent=1 // pred_region
      %44 = dma.done [#allocation4], 6144
    $region33: #{costco_forward.1} parent=1 // pred_fallthru
      _
    %v45 = vld [vmem:[%s0] sm:$0xff]
    %v46 = vld [vmem:[%s1] sm:$0xff]
    %v47 = vld [vmem:[%s1 + $0x8] sm:$0xff]
    %v48 = vld [vmem:[%s1 + $0x10] sm:$0xff]
    %v49 = vld [vmem:[%s1 + $0x18] sm:$0xff]
    %v50 = vld [vmem:[%s1 + $0x20] sm:$0xff]
    %v51 = vld [vmem:[%s1 + $0x28] sm:$0xff]
    %v52 = vld [vmem:[%s1 + $0x30] sm:$0xff]
    %v53 = vld [vmem:[%s1 + $0x38] sm:$0xff]
    %v54 = vld [vmem:[%s1 + $0x40] sm:$0xff]
    %v55 = vld [vmem:[%s1 + $0x48] sm:$0xff]
    %v56 = vld [vmem:[%s1 + $0x50] sm:$0xff]
    %v57 = vld [vmem:[%s1 + $0x58] sm:$0xff]
    %v58 = vld [vmem:[%s1 + $0x60] sm:$0xff]
    %v59 = vld [vmem:[%s1 + $0x68] sm:$0xff]
    %v60 = vld [vmem:[%s1 + $0x70] sm:$0xff]
    %v61 = vld [vmem:[%s1 + $0x78] sm:$0xff]
    %v62 = vld [vmem:[%s1 + $0x80] sm:$0xff]
    %v63 = vld [vmem:[%s1 + $0x88] sm:$0xff]
    %v64 = vld [vmem:[%s2] sm:$0x7]
    %v66 = vperm.slane %v64, 0
    %v67 = vperm.slane %v64, 1
    %v68 = vperm.slane %v64, 2
    %vm72 = vcmask 392192
    %v74 = vsel %vm72, %v45, 0
    %76 = vmatpush.msra.mxu0 0.0
    %77 = vmatpush.msra.mxu0 0.0
    %78 = vmatpush.msra.mxu0 0.0
    %79 = vmatpush.msra.mxu0 0.0
    %80 = vmatpush.msra.mxu0 0.0
    %81 = vmatpush.msra.mxu0 0.0
    %82 = vmatpush.msra.mxu0 0.0
    %83 = vmatpush.msra.mxu0 0.0
    %84 = vmatpush.msra.mxu0 0.0
    %85 = vmatpush.msra.mxu0 0.0
    %86 = vmatpush.msra.mxu0 %v61
    %87 = vmatpush.msra.mxu0 %v58
    %88 = vmatpush.msra.mxu0 %v55
    %89 = vmatpush.msra.mxu0 %v52
    %90 = vmatpush.msra.mxu0 %v49
    %91 = vmatpush.msra.mxu0 %v46
    %92 = vmatmul.f32.gmra.mxu0 %v74
    %v93 = vpop.f32.mrf.mxu0
    %v94 = vadd.f32 %v66, %v93
    %95 = vdwg.mxu0
    %96 = vmatpush.msra.mxu0 0.0
    %97 = vmatpush.msra.mxu0 0.0
    %98 = vmatpush.msra.mxu0 0.0
    %99 = vmatpush.msra.mxu0 0.0
    %100 = vmatpush.msra.mxu0 0.0
    %101 = vmatpush.msra.mxu0 0.0
    %102 = vmatpush.msra.mxu0 0.0
    %103 = vmatpush.msra.mxu0 0.0
    %104 = vmatpush.msra.mxu0 0.0
    %105 = vmatpush.msra.mxu0 0.0
    %106 = vmatpush.msra.mxu0 %v62
    %107 = vmatpush.msra.mxu0 %v59
    %108 = vmatpush.msra.mxu0 %v56
    %109 = vmatpush.msra.mxu0 %v53
    %110 = vmatpush.msra.mxu0 %v50
    %111 = vmatpush.msra.mxu0 %v47
    %112 = vmatmul.f32.gmra.mxu0 %v74
    %v113 = vpop.f32.mrf.mxu0
    %v114 = vadd.f32 %v67, %v113
    %115 = vdwg.mxu0
    %116 = vmatpush.msra.mxu0 0.0
    %117 = vmatpush.msra.mxu0 0.0
    %118 = vmatpush.msra.mxu0 0.0
    %119 = vmatpush.msra.mxu0 0.0
    %120 = vmatpush.msra.mxu0 0.0
    %121 = vmatpush.msra.mxu0 0.0
    %122 = vmatpush.msra.mxu0 0.0
    %123 = vmatpush.msra.mxu0 0.0
    %124 = vmatpush.msra.mxu0 0.0
    %125 = vmatpush.msra.mxu0 0.0
    %126 = vmatpush.msra.mxu0 %v63
    %127 = vmatpush.msra.mxu0 %v60
    %128 = vmatpush.msra.mxu0 %v57
    %129 = vmatpush.msra.mxu0 %v54
    %130 = vmatpush.msra.mxu0 %v51
    %131 = vmatpush.msra.mxu0 %v48
    %132 = vmatmul.f32.gmra.mxu0 %v74
    %v133 = vpop.f32.mrf.mxu0
    %v134 = vadd.f32 %v68, %v133
    %135 = vdwg.mxu0
    %v136 = vmax.f32 %v94, 0.0
    %v137 = vmax.f32 %v114, 0.0
    %v138 = vmax.f32 %v134, 0.0
    %v139 = vld [vmem:[#allocation3] sm:$0xff]
    %v140 = vld [vmem:[#allocation3 + $0x8] sm:$0xff]
    %v141 = vld [vmem:[#allocation3 + $0x10] sm:$0xff]
    %v142 = vld [vmem:[#allocation3 + $0x18] sm:$0xff]
    %v143 = vld [vmem:[#allocation3 + $0x20] sm:$0xff]
    %v144 = vld [vmem:[#allocation3 + $0x28] sm:$0xff]
    %v145 = vld [vmem:[#allocation3 + $0x30] sm:$0xff]
    %v146 = vld [vmem:[#allocation3 + $0x38] sm:$0xff]
    %v147 = vld [vmem:[#allocation3 + $0x40] sm:$0xff]
    %v148 = vld [vmem:[#allocation3 + $0x48] sm:$0xff]
    %v149 = vld [vmem:[#allocation3 + $0x50] sm:$0xff]
    %v150 = vld [vmem:[#allocation3 + $0x58] sm:$0xff]
    %v151 = vld [vmem:[#allocation3 + $0x60] sm:$0xff]
    %v152 = vld [vmem:[#allocation3 + $0x68] sm:$0xff]
    %v153 = vld [vmem:[#allocation3 + $0x70] sm:$0xff]
    %v154 = vld [vmem:[#allocation3 + $0x78] sm:$0xff]
    %v155 = vld [vmem:[#allocation3 + $0x80] sm:$0xff]
    %v156 = vld [vmem:[#allocation3 + $0x88] sm:$0xff]
    %v157 = vld [vmem:[#allocation3 + $0x90] sm:$0xff]
    %v158 = vld [vmem:[#allocation3 + $0x98] sm:$0xff]
    %v159 = vld [vmem:[#allocation3 + $0xa0] sm:$0xff]
    %v160 = vld [vmem:[#allocation3 + $0xa8] sm:$0xff]
    %v161 = vld [vmem:[#allocation3 + $0xb0] sm:$0xff]
    %v162 = vld [vmem:[#allocation3 + $0xb8] sm:$0xff]
    %v163 = vld [vmem:[#allocation3 + $0xc0] sm:$0xff]
    %v164 = vld [vmem:[#allocation3 + $0xc8] sm:$0xff]
    %v165 = vld [vmem:[#allocation3 + $0xd0] sm:$0xff]
    %v166 = vld [vmem:[#allocation3 + $0xd8] sm:$0xff]
    %v167 = vld [vmem:[#allocation3 + $0xe0] sm:$0xff]
    %v168 = vld [vmem:[#allocation3 + $0xe8] sm:$0xff]
    %v169 = vld [vmem:[#allocation3 + $0xf0] sm:$0xff]
    %v170 = vld [vmem:[#allocation3 + $0xf8] sm:$0xff]
    %v171 = vld [vmem:[#allocation3 + $0x100] sm:$0xff]
    %v172 = vld [vmem:[#allocation3 + $0x108] sm:$0xff]
    %v173 = vld [vmem:[#allocation3 + $0x110] sm:$0xff]
    %v174 = vld [vmem:[#allocation3 + $0x118] sm:$0xff]
    %v175 = vld [vmem:[#allocation3 + $0x120] sm:$0xff]
    %v176 = vld [vmem:[#allocation3 + $0x128] sm:$0xff]
    %v177 = vld [vmem:[#allocation3 + $0x130] sm:$0xff]
    %v178 = vld [vmem:[#allocation3 + $0x138] sm:$0xff]
    %v179 = vld [vmem:[#allocation3 + $0x140] sm:$0xff]
    %v180 = vld [vmem:[#allocation3 + $0x148] sm:$0xff]
    %v181 = vld [vmem:[#allocation3 + $0x150] sm:$0xff]
    %v182 = vld [vmem:[#allocation3 + $0x158] sm:$0xff]
    %v183 = vld [vmem:[#allocation3 + $0x160] sm:$0xff]
    %v184 = vld [vmem:[#allocation3 + $0x168] sm:$0xff]
    %v185 = vld [vmem:[#allocation3 + $0x170] sm:$0xff]
    %v186 = vld [vmem:[#allocation3 + $0x178] sm:$0xff]
    %v187 = vld [vmem:[%s4] sm:$0x1]
    %v189 = vperm.slane %v187, 0
    %191 = vmatpush.msra.mxu0 %v154
    %192 = vmatpush.msra.mxu0 %v153
    %193 = vmatpush.msra.mxu0 %v152
    %194 = vmatpush.msra.mxu0 %v151
    %195 = vmatpush.msra.mxu0 %v150
    %196 = vmatpush.msra.mxu0 %v149
    %197 = vmatpush.msra.mxu0 %v148
    %198 = vmatpush.msra.mxu0 %v147
    %199 = vmatpush.msra.mxu0 %v146
    %200 = vmatpush.msra.mxu0 %v145
    %201 = vmatpush.msra.mxu0 %v144
    %202 = vmatpush.msra.mxu0 %v143
    %203 = vmatpush.msra.mxu0 %v142
    %204 = vmatpush.msra.mxu0 %v141
    %205 = vmatpush.msra.mxu0 %v140
    %206 = vmatpush.msra.mxu0 %v139
    %207 = vmatmul.f32.gmra.mxu0 %v136
    %v208 = vpop.f32.mrf.mxu0
    %v209 = vadd.f32 %v189, %v208
    %210 = vdwg.mxu0
    %211 = vmatpush.msra.mxu0 %v170
    %212 = vmatpush.msra.mxu0 %v169
    %213 = vmatpush.msra.mxu0 %v168
    %214 = vmatpush.msra.mxu0 %v167
    %215 = vmatpush.msra.mxu0 %v166
    %216 = vmatpush.msra.mxu0 %v165
    %217 = vmatpush.msra.mxu0 %v164
    %218 = vmatpush.msra.mxu0 %v163
    %219 = vmatpush.msra.mxu0 %v162
    %220 = vmatpush.msra.mxu0 %v161
    %221 = vmatpush.msra.mxu0 %v160
    %222 = vmatpush.msra.mxu0 %v159
    %223 = vmatpush.msra.mxu0 %v158
    %224 = vmatpush.msra.mxu0 %v157
    %225 = vmatpush.msra.mxu0 %v156
    %226 = vmatpush.msra.mxu0 %v155
    %227 = vmatmul.f32.gmra.mxu0 %v137
    %v228 = vpop.f32.mrf.mxu0
    %v229 = vadd.f32 %v209, %v228
    %230 = vdwg.mxu0
    %231 = vmatpush.msra.mxu0 %v186
    %232 = vmatpush.msra.mxu0 %v185
    %233 = vmatpush.msra.mxu0 %v184
    %234 = vmatpush.msra.mxu0 %v183
    %235 = vmatpush.msra.mxu0 %v182
    %236 = vmatpush.msra.mxu0 %v181
    %237 = vmatpush.msra.mxu0 %v180
    %238 = vmatpush.msra.mxu0 %v179
    %239 = vmatpush.msra.mxu0 %v178
    %240 = vmatpush.msra.mxu0 %v177
    %241 = vmatpush.msra.mxu0 %v176
    %242 = vmatpush.msra.mxu0 %v175
    %243 = vmatpush.msra.mxu0 %v174
    %244 = vmatpush.msra.mxu0 %v173
    %245 = vmatpush.msra.mxu0 %v172
    %246 = vmatpush.msra.mxu0 %v171
    %247 = vmatmul.f32.gmra.mxu0 %v138
    %v248 = vpop.f32.mrf.mxu0
    %v249 = vadd.f32 %v229, %v248
    %250 = vdwg.mxu0
    %v251 = vmax.f32 %v249, 0.0
    %v252 = vld [vmem:[%s5] sm:$0x1]
    %v253 = vld [vmem:[#allocation2] sm:$0x1]
    %255 = vset.pattern.permute.xlu0 0
    %256 = vperm.xlu0 %255, %v253
    %v257 = vpop.permute.xlu0 %256
    %v259 = vperm.slane %v257, 0
    %260 = vmatpush.xpose.msra.mxu0 0.0
    %261 = vmatpush.xpose.msra.mxu0 0.0
    %262 = vmatpush.xpose.msra.mxu0 0.0
    %263 = vmatpush.xpose.msra.mxu0 0.0
    %264 = vmatpush.xpose.msra.mxu0 0.0
    %265 = vmatpush.xpose.msra.mxu0 0.0
    %266 = vmatpush.xpose.msra.mxu0 0.0
    %267 = vmatpush.xpose.msra.mxu0 0.0
    %268 = vmatpush.xpose.msra.mxu0 0.0
    %269 = vmatpush.xpose.msra.mxu0 0.0
    %270 = vmatpush.xpose.msra.mxu0 0.0
    %271 = vmatpush.xpose.msra.mxu0 0.0
    %272 = vmatpush.xpose.msra.mxu0 0.0
    %273 = vmatpush.xpose.msra.mxu0 0.0
    %274 = vmatpush.xpose.msra.mxu0 0.0
    %275 = vmatpush.xpose.msra.mxu0 %v251
    %276 = vmatmul.f32.gmra.mxu0 %v252
    %v277 = vpop.f32.mrf.mxu0
    %v278 = vadd.f32 %v259, %v277
    %279 = vdwg.mxu0
    %vm280 = vcmask 57344
    %281 = vst.msk [vmem:[#allocation6] sm:$0x1] %vm280, %v278
    // Predicated region
    $region34: #{costco_forward.1} parent=1 // pred_check
      _
    $region35: #{costco_forward.1} parent=1 // pred_check_branch
      %283 = sbr.rel (0) target = $region37
    $region36: #{costco_forward.1} parent=1 // pred_region
      %285 = vsyncadd [#allocation5], 0
      %s287 = sshll.u32 [#allocation6], 4
      %s288 = int_to_ptr.vmem [resolvable:$true] %s287
      %s289 = sshll.u32 %s7, 4
      %s290 = int_to_ptr.hbm [resolvable:$true] %s289
      %292 = dma.vmem_to_hbm [thread:$0]  %s288, 16, %s290, [#allocation5]
    $region37: #{costco_forward.1} parent=1 // pred_fallthru
      _
    // Predicated region
    $region38: #{costco_forward.1} parent=1 // pred_check
      _
    $region39: #{costco_forward.1} parent=1 // pred_check_branch
      %294 = sbr.rel (0) target = $region41
    $region40: #{costco_forward.1} parent=1 // pred_region
      %296 = dma.done [#allocation5], 16
    $region41: #{costco_forward.1} parent=1 // pred_fallthru
      _
    %297 = vsyncpa [#allocation4], 1
    %298 = vsyncpa [#allocation5], 1

</llo_original>
